<compile_context>
chip_gen: v5e
topology: v5e:2x2
jax: 0.10.0
libtpu: 0.0.40
codegen_flags: <defaults>
</compile_context>

<pallas_src>
import functools

import jax
import jax.numpy as jnp
from jax.experimental import pallas as pl
from jax.experimental.pallas import tpu as pltpu


def _pick_tile(n, rows_per_col, itemsize=4, budget=4 * 1024 * 1024):
    """Largest lane tile that divides N and keeps one (rows_per_col, TN) tile <= budget."""
    for t in (8192, 4096, 2048, 1024, 512, 256, 128):
        if n % t == 0 and rows_per_col * t * itemsize <= budget:
            return t
    for t in (8192, 4096, 2048, 1024, 512, 256, 128):
        if n % t == 0:
            return t
    return n  # fallback: single full tile (block dim == array dim is always legal)


def _vmem_limit(bytes_needed):
    """Per-kernel VMEM limit: 2x headroom, floor 8 MiB, ceiling 48 MiB (< v7x 64 MiB)."""
    return int(min(max(2 * bytes_needed, 8 << 20), 48 << 20))


def _softplus(x):
    # PyTorch F.softplus(beta=1, threshold=20)
    return jnp.where(x > 20.0, x, jnp.log1p(jnp.exp(jnp.minimum(x, 20.0))))


# --------------------------------------------------------------------------------------
# Fused score network (small shapes): one HBM read of feat, h kept resident in VMEM.
# --------------------------------------------------------------------------------------
def _fused_kernel(feat_ref, w1_ref, gamma_ref, beta_ref, w2_ref, b2_ref, la_ref, h_scr,
                  *, inv_count):
    B = feat_ref.shape[0]
    C = w1_ref.shape[0]
    ssum = jnp.zeros((C, 1), jnp.float32)
    ssq = jnp.zeros((C, 1), jnp.float32)
    for b in range(B):  # small B by construction (fused path is size-gated)
        h = jnp.dot(w1_ref[...], feat_ref[b].astype(w1_ref.dtype),
                    preferred_element_type=jnp.float32)              # (C, N)
        h_scr[b] = h
        ssum = ssum + jnp.sum(h, axis=1, keepdims=True)
        ssq = ssq + jnp.sum(h * h, axis=1, keepdims=True)
    mean = ssum * inv_count
    var = jnp.maximum(ssq * inv_count - mean * mean, 0.0)            # biased var (BN train)
    scale = gamma_ref[...] * jax.lax.rsqrt(var + 1e-5)               # (C, 1)
    shift = beta_ref[...] - mean * scale                             # (C, 1)
    bias2 = b2_ref[0, 0]
    for b in range(B):
        hn = h_scr[b] * scale + shift
        hr = jnp.maximum(hn, 0.0)
        logits = jnp.sum(w2_ref[...] * hr, axis=0, keepdims=True) + bias2   # (1, N)
        la_ref[b] = _softplus(logits)


# --------------------------------------------------------------------------------------
# Two-pass score network (large shapes).
# --------------------------------------------------------------------------------------
def _stats_kernel(feat_ref, w1_ref, sum_ref, sq_ref):
    """Per-batch partial per-channel sum / sumsq of h = w1 @ feat (folded in wrapper)."""
    @pl.when(pl.program_id(1) == 0)
    def _():
        sum_ref[...] = jnp.zeros_like(sum_ref)
        sq_ref[...] = jnp.zeros_like(sq_ref)

    h = jnp.dot(w1_ref[...], feat_ref[...].astype(w1_ref.dtype),
                preferred_element_type=jnp.float32)                  # (C, TN)
    sum_ref[...] += jnp.sum(h, axis=1, keepdims=True)
    sq_ref[...] += jnp.sum(h * h, axis=1, keepdims=True)


def _logits_kernel(feat_ref, w1s_ref, shift_ref, w2_ref, b2_ref, la_ref):
    """h = (scale*w1) @ feat + shift ; ReLU ; w2-reduction (VPU + sublane sum) ; softplus."""
    h = jnp.dot(w1s_ref[...], feat_ref[...].astype(w1s_ref.dtype),
                preferred_element_type=jnp.float32)                  # (C, TN)
    hr = jnp.maximum(h + shift_ref[...], 0.0)
    logits = jnp.sum(w2_ref[...] * hr, axis=0, keepdims=True) + b2_ref[0, 0]   # (1, TN)
    la_ref[...] = _softplus(logits)


# --------------------------------------------------------------------------------------
# Hard gather of the sampled columns (forward value of the straight-through score).
# Tiled over N with a resident (C, S_pad) accumulator.
# --------------------------------------------------------------------------------------
def _gather_kernel(idx_ref, feat_ref, out_ref):
    t = pl.program_id(1)

    @pl.when(t == 0)
    def _():
        out_ref[...] = jnp.zeros_like(out_ref)

    TN = feat_ref.shape[1]
    S_pad = idx_ref.shape[1]
    rows = jax.lax.broadcasted_iota(jnp.int32, (TN, S_pad), 0) + t * TN
    onehot = (rows == idx_ref[...]).astype(feat_ref.dtype)           # (TN, S_pad)
    out_ref[...] += jnp.dot(feat_ref[...], onehot,
                            preferred_element_type=jnp.float32)      # (C, S_pad)


# --------------------------------------------------------------------------------------
# Wrapper
# --------------------------------------------------------------------------------------
def active_sampling_forward(points_xyz, features, params, num_point, sample_key,
                            fuse_vmem_bytes=4 * 1024 * 1024):
    B, N, _ = points_xyz.shape
    C = features.shape[1]
    S = num_point
    f_isz = features.dtype.itemsize

    w1 = params["w1"].astype(jnp.float32)                      # (C, C)
    gamma = params["gamma"].reshape(C, 1).astype(jnp.float32)
    beta = params["beta"].reshape(C, 1).astype(jnp.float32)
    w2col = params["w2"].reshape(C, 1).astype(jnp.float32)
    b2 = params["b2"].reshape(1, 1).astype(jnp.float32)

    # ------------------------- score network -> softplus logits -------------------------
    if B * C * N * 4 <= fuse_vmem_bytes:
        # Fused single-launch path: feat + f32 h scratch resident in VMEM.
        need = B * C * N * (f_isz + 4) + B * N * 4 + C * C * 4 + 4 * C * 4
        la = pl.pallas_call(
            functools.partial(_fused_kernel, inv_count=1.0 / float(B * N)),
            out_shape=jax.ShapeDtypeStruct((B, 1, N), jnp.float32),
            grid=(1,),
            in_specs=[
                pl.BlockSpec((B, C, N), lambda i: (0, 0, 0)),
                pl.BlockSpec((C, C), lambda i: (0, 0)),
                pl.BlockSpec((C, 1), lambda i: (0, 0)),
                pl.BlockSpec((C, 1), lambda i: (0, 0)),
                pl.BlockSpec((C, 1), lambda i: (0, 0)),
                pl.BlockSpec(memory_space=pltpu.MemorySpace.SMEM),       # b2 scalar
            ],
            out_specs=pl.BlockSpec((B, 1, N), lambda i: (0, 0, 0)),
            scratch_shapes=[pltpu.VMEM((B, C, N), jnp.float32)],
            compiler_params=pltpu.CompilerParams(
                dimension_semantics=("arbitrary",),
                vmem_limit_bytes=_vmem_limit(need)),
        )(features, w1, gamma, beta, w2col, b2)
    else:
        TN = _pick_tile(N, C, f_isz)
        T = N // TN
        need = 2 * C * TN * f_isz + C * TN * 4 + C * C * 4 + 8 * C * 4 + 4 * TN * 4
        cap = _vmem_limit(need)

        # pass 1: per-batch partial BN statistics (batch axis parallel -> both v7x cores)
        hsum, hsq = pl.pallas_call(
            _stats_kernel,
            out_shape=(jax.ShapeDtypeStruct((B, C, 1), jnp.float32),
                       jax.ShapeDtypeStruct((B, C, 1), jnp.float32)),
            grid=(B, T),
            in_specs=[
                pl.BlockSpec((None, C, TN), lambda b, t: (b, 0, t)),
                pl.BlockSpec((C, C), lambda b, t: (0, 0)),
            ],
            out_specs=(pl.BlockSpec((None, C, 1), lambda b, t: (b, 0, 0)),
                       pl.BlockSpec((None, C, 1), lambda b, t: (b, 0, 0))),
            compiler_params=pltpu.CompilerParams(
                dimension_semantics=("parallel", "arbitrary"),
                vmem_limit_bytes=cap),
        )(features, w1)

        # fold stats -> scale/shift, and fold scale into w1 (wrapper-side, C-sized math)
        inv_count = 1.0 / float(B * N)
        mean = jnp.sum(hsum, axis=0) * inv_count                    # (C, 1)
        var = jnp.maximum(jnp.sum(hsq, axis=0) * inv_count - mean * mean, 0.0)
        scale = gamma * jax.lax.rsqrt(var + 1e-5)                   # (C, 1)
        shift = beta - mean * scale                                 # (C, 1)
        w1s = scale * w1                                            # (C, C)

        # pass 2: normalized score network -> softplus logits (fully parallel)
        la = pl.pallas_call(
            _logits_kernel,
            out_shape=jax.ShapeDtypeStruct((B, 1, N), jnp.float32),
            grid=(B, T),
            in_specs=[
                pl.BlockSpec((None, C, TN), lambda b, t: (b, 0, t)),
                pl.BlockSpec((C, C), lambda b, t: (0, 0)),
                pl.BlockSpec((C, 1), lambda b, t: (0, 0)),
                pl.BlockSpec((C, 1), lambda b, t: (0, 0)),
                pl.BlockSpec(memory_space=pltpu.MemorySpace.SMEM),   # b2 scalar
            ],
            out_specs=pl.BlockSpec((None, 1, TN), lambda b, t: (b, 0, t)),
            compiler_params=pltpu.CompilerParams(
                dimension_semantics=("parallel", "parallel"),
                vmem_limit_bytes=cap),
        )(features, w1s, shift, w2col, b2)

    logits_act = la.reshape(B, N)

    # ---- multinomial without replacement (JAX glue): Gumbel top-k on log-weights ----
    g = jax.random.gumbel(sample_key, (B, N), dtype=jnp.float32)
    log_w = jnp.log(jnp.maximum(logits_act, jnp.finfo(jnp.float32).tiny))
    _, idx = jax.lax.top_k(log_w + g, S)
    idx = idx.astype(jnp.int32)                                     # (B, S)

    # ---- hard gather of sampled features (Pallas, tiled over N, resident accumulator) ----
    S_pad = ((S + 127) // 128) * 128                                # lane-dense outputs
    idx_p = jnp.full((B, 1, S_pad), -1, dtype=jnp.int32).at[:, 0, :S].set(idx)
    TN_g = _pick_tile(N, C + S_pad, max(f_isz, 4))
    T_g = N // TN_g
    need_g = (2 * C * TN_g * f_isz + C * S_pad * 4 + TN_g * S_pad * 4
              + 2 * S_pad * 4 + C * S_pad * 4)
    fea_s = pl.pallas_call(
        _gather_kernel,
        out_shape=jax.ShapeDtypeStruct((B, C, S_pad), jnp.float32),
        grid=(B, T_g),
        in_specs=[
            pl.BlockSpec((None, 1, S_pad), lambda b, t: (b, 0, 0)),
            pl.BlockSpec((None, C, TN_g), lambda b, t: (b, 0, t)),
        ],
        out_specs=pl.BlockSpec((None, C, S_pad), lambda b, t: (b, 0, 0)),
        compiler_params=pltpu.CompilerParams(
            dimension_semantics=("parallel", "arbitrary"),
            vmem_limit_bytes=_vmem_limit(need_g)),
    )(idx_p, features)

    new_fea = fea_s[:, :, :S].astype(features.dtype)                # (B, C, S)
    # xyz is tiny (B*N*3): plain XLA gather, no Pallas round-trip / transpose copies.
    new_xyz = jnp.take_along_axis(points_xyz, idx[:, :, None], axis=1)   # (B, S, 3)
    return new_xyz, new_fea, idx, logits_act


if __name__ == "__main__":
    B, C, N, S = 2, 32, 256, 64
    key = jax.random.PRNGKey(0)
    k_xyz, k_feat, k_w1, k_w2, k_samp = jax.random.split(key, 5)

    points_xyz = jax.random.normal(k_xyz, (B, N, 3), dtype=jnp.float32)
    features = jax.random.normal(k_feat, (B, C, N), dtype=jnp.float32)

    # Module parameters: Conv1d(C,C,1,no-bias), BatchNorm1d(C), Conv1d(C,1,1) with bias=0
    params = {
        "w1": jax.random.normal(k_w1, (C, C), dtype=jnp.float32) * 0.1,   # (C, C, 1) -> (C, C)
        "gamma": jnp.ones((C, 1), jnp.float32),                           # BN weight
        "beta": jnp.zeros((C, 1), jnp.float32),                           # BN bias
        "w2": jax.random.normal(k_w2, (1, C), dtype=jnp.float32) * 0.1,   # (1, C, 1) -> (1, C)
        "b2": jnp.zeros((1, 1), jnp.float32),                             # bias .fill_(0.0)
    }

    # Small-shape fused path and forced tiled two-pass path (exercise all kernels).
    out_fused = active_sampling_forward(points_xyz, features, params, S, k_samp)
    out_tiled = active_sampling_forward(points_xyz, features, params, S, k_samp,
                                        fuse_vmem_bytes=0)
    jax.block_until_ready((out_fused, out_tiled))

    for new_xyz, new_fea, indices, logits_act in (out_fused, out_tiled):
        assert new_xyz.shape == (B, S, 3) and new_xyz.dtype == jnp.float32
        assert new_fea.shape == (B, C, S) and new_fea.dtype == features.dtype
        assert indices.shape == (B, S)
        assert logits_act.shape == (B, N)
        assert bool(jnp.all(jnp.isfinite(new_xyz))) and bool(jnp.all(jnp.isfinite(new_fea)))
        assert bool(jnp.all(jnp.isfinite(logits_act)))
        # sanity: gathered xyz/features must match a direct take at the sampled indices
        ref_xyz = jnp.take_along_axis(points_xyz, indices[:, :, None], axis=1)
        ref_fea = jnp.take_along_axis(features, indices[:, None, :], axis=2)
        assert bool(jnp.allclose(new_xyz, ref_xyz, atol=1e-5))
        assert bool(jnp.allclose(new_fea, ref_fea, atol=1e-5))

    # fused and two-pass paths compute the same score network (up to matmul rounding)
    assert bool(jnp.allclose(out_fused[3], out_tiled[3], atol=1e-3, rtol=1e-3))
    print("KERNEL_OK")
</pallas_src>

<mosaic_0001>
module attributes {stable_mosaic.version = 11 : i64} {
  func.func @_fused_kernel(%arg0: i32, %arg1: memref<2x32x256xf32, #tpu.memory_space<vmem>>, %arg2: memref<32x32xf32, #tpu.memory_space<vmem>>, %arg3: memref<32x1xf32, #tpu.memory_space<vmem>>, %arg4: memref<32x1xf32, #tpu.memory_space<vmem>>, %arg5: memref<32x1xf32, #tpu.memory_space<vmem>>, %arg6: memref<1x1xf32, #tpu.memory_space<smem>>, %arg7: memref<2x1x256xf32, #tpu.memory_space<vmem>>, %arg8: memref<2x32x256xf32, #tpu.memory_space<vmem>>) attributes {dimension_semantics = [#tpu.dimension_semantics<arbitrary>], iteration_bounds = array<i64: 1>, scalar_prefetch = 0 : i64, scratch_operands = 1 : i64, tpu.core_type = #tpu.core_type<tc>, window_params = [{pipeline_mode = #tpu.pipeline_mode<synchronous>, transform_indices = @transform_0, window_bounds = array<i64: 2, 32, 256>}, {pipeline_mode = #tpu.pipeline_mode<synchronous>, transform_indices = @transform_1, window_bounds = array<i64: 32, 32>}, {pipeline_mode = #tpu.pipeline_mode<synchronous>, transform_indices = @transform_2, window_bounds = array<i64: 32, 1>}, {pipeline_mode = #tpu.pipeline_mode<synchronous>, transform_indices = @transform_3, window_bounds = array<i64: 32, 1>}, {pipeline_mode = #tpu.pipeline_mode<synchronous>, transform_indices = @transform_4, window_bounds = array<i64: 32, 1>}, {transform_indices = @transform_5, window_bounds = array<i64: 1, 1>}, {pipeline_mode = #tpu.pipeline_mode<synchronous>, transform_indices = @transform_6, window_bounds = array<i64: 2, 1, 256>}]} {
    %cst = arith.constant 0.000000e+00 : f32
    %0 = vector.broadcast %cst : f32 to vector<32x1xf32>
    %cst_0 = arith.constant 0.000000e+00 : f32
    %1 = vector.broadcast %cst_0 : f32 to vector<32x1xf32>
    %c0 = arith.constant 0 : index
    %c0_1 = arith.constant 0 : index
    %2 = vector.load %arg2[%c0, %c0_1] : memref<32x32xf32, #tpu.memory_space<vmem>>, vector<32x32xf32>
    %c0_2 = arith.constant 0 : index
    %c0_3 = arith.constant 0 : index
    %c0_4 = arith.constant 0 : index
    %3 = vector.load %arg1[%c0_2, %c0_3, %c0_4] : memref<2x32x256xf32, #tpu.memory_space<vmem>>, vector<1x32x256xf32>
    %4 = vector.shape_cast %3 : vector<1x32x256xf32> to vector<32x256xf32>
    %cst_5 = arith.constant dense<0.000000e+00> : vector<32x256xf32>
    %5 = tpu.matmul %2, %4, %cst_5 {dimension_numbers = #tpu.dot_dimension_numbers<[1], [0], [0], [1], [0, 0, 1, 1], [], []>} : vector<32x32xf32>, vector<32x256xf32>, vector<32x256xf32> -> vector<32x256xf32>
    %c0_6 = arith.constant 0 : index
    %c0_7 = arith.constant 0 : index
    %c0_8 = arith.constant 0 : index
    %6 = vector.load %arg8[%c0_6, %c0_7, %c0_8] : memref<2x32x256xf32, #tpu.memory_space<vmem>>, vector<1x32x256xf32>
    %7 = vector.shape_cast %6 : vector<1x32x256xf32> to vector<32x256xf32>
    %8 = vector.shape_cast %5 : vector<32x256xf32> to vector<1x32x256xf32>
    tpu.vector_store %arg8[%c0_6, %c0_7, %c0_8], %8 {strides = array<i32>} : memref<2x32x256xf32, #tpu.memory_space<vmem>>, vector<1x32x256xf32>,
    %cst_9 = arith.constant dense<0.000000e+00> : vector<32xf32>
    %9 = vector.multi_reduction <add>, %5, %cst_9 [1] : vector<32x256xf32> to vector<32xf32>
    %10 = vector.shape_cast %9 : vector<32xf32> to vector<32x1xf32>
    %11 = arith.addf %0, %10 : vector<32x1xf32>
    %12 = arith.mulf %5, %5 : vector<32x256xf32>
    %cst_10 = arith.constant dense<0.000000e+00> : vector<32xf32>
    %13 = vector.multi_reduction <add>, %12, %cst_10 [1] : vector<32x256xf32> to vector<32xf32>
    %14 = vector.shape_cast %13 : vector<32xf32> to vector<32x1xf32>
    %15 = arith.addf %1, %14 : vector<32x1xf32>
    %c0_11 = arith.constant 0 : index
    %c0_12 = arith.constant 0 : index
    %16 = vector.load %arg2[%c0_11, %c0_12] : memref<32x32xf32, #tpu.memory_space<vmem>>, vector<32x32xf32>
    %c1 = arith.constant 1 : index
    %c0_13 = arith.constant 0 : index
    %c0_14 = arith.constant 0 : index
    %17 = vector.load %arg1[%c1, %c0_13, %c0_14] : memref<2x32x256xf32, #tpu.memory_space<vmem>>, vector<1x32x256xf32>
    %18 = vector.shape_cast %17 : vector<1x32x256xf32> to vector<32x256xf32>
    %cst_15 = arith.constant dense<0.000000e+00> : vector<32x256xf32>
    %19 = tpu.matmul %16, %18, %cst_15 {dimension_numbers = #tpu.dot_dimension_numbers<[1], [0], [0], [1], [0, 0, 1, 1], [], []>} : vector<32x32xf32>, vector<32x256xf32>, vector<32x256xf32> -> vector<32x256xf32>
    %c1_16 = arith.constant 1 : index
    %c0_17 = arith.constant 0 : index
    %c0_18 = arith.constant 0 : index
    %20 = vector.load %arg8[%c1_16, %c0_17, %c0_18] : memref<2x32x256xf32, #tpu.memory_space<vmem>>, vector<1x32x256xf32>
    %21 = vector.shape_cast %20 : vector<1x32x256xf32> to vector<32x256xf32>
    %22 = vector.shape_cast %19 : vector<32x256xf32> to vector<1x32x256xf32>
    tpu.vector_store %arg8[%c1_16, %c0_17, %c0_18], %22 {strides = array<i32>} : memref<2x32x256xf32, #tpu.memory_space<vmem>>, vector<1x32x256xf32>,
    %cst_19 = arith.constant dense<0.000000e+00> : vector<32xf32>
    %23 = vector.multi_reduction <add>, %19, %cst_19 [1] : vector<32x256xf32> to vector<32xf32>
    %24 = vector.shape_cast %23 : vector<32xf32> to vector<32x1xf32>
    %25 = arith.addf %11, %24 : vector<32x1xf32>
    %26 = arith.mulf %19, %19 : vector<32x256xf32>
    %cst_20 = arith.constant dense<0.000000e+00> : vector<32xf32>
    %27 = vector.multi_reduction <add>, %26, %cst_20 [1] : vector<32x256xf32> to vector<32xf32>
    %28 = vector.shape_cast %27 : vector<32xf32> to vector<32x1xf32>
    %29 = arith.addf %15, %28 : vector<32x1xf32>
    %cst_21 = arith.constant 0.001953125 : f32
    %30 = vector.broadcast %cst_21 : f32 to vector<32x1xf32>
    %31 = arith.mulf %25, %30 : vector<32x1xf32>
    %cst_22 = arith.constant 0.001953125 : f32
    %32 = vector.broadcast %cst_22 : f32 to vector<32x1xf32>
    %33 = arith.mulf %29, %32 : vector<32x1xf32>
    %34 = arith.mulf %31, %31 : vector<32x1xf32>
    %35 = arith.subf %33, %34 : vector<32x1xf32>
    %cst_23 = arith.constant 0.000000e+00 : f32
    %36 = vector.broadcast %cst_23 : f32 to vector<32x1xf32>
    %37 = arith.maximumf %35, %36 : vector<32x1xf32>
    %c0_24 = arith.constant 0 : index
    %c0_25 = arith.constant 0 : index
    %38 = vector.load %arg3[%c0_24, %c0_25] : memref<32x1xf32, #tpu.memory_space<vmem>>, vector<32x1xf32>
    %cst_26 = arith.constant 9.99999974E-6 : f32
    %39 = vector.broadcast %cst_26 : f32 to vector<32x1xf32>
    %40 = arith.addf %37, %39 : vector<32x1xf32>
    %41 = math.rsqrt %40 : vector<32x1xf32>
    %42 = arith.mulf %38, %41 : vector<32x1xf32>
    %c0_27 = arith.constant 0 : index
    %c0_28 = arith.constant 0 : index
    %43 = vector.load %arg4[%c0_27, %c0_28] : memref<32x1xf32, #tpu.memory_space<vmem>>, vector<32x1xf32>
    %44 = arith.mulf %31, %42 : vector<32x1xf32>
    %45 = arith.subf %43, %44 : vector<32x1xf32>
    %c0_29 = arith.constant 0 : index
    %c0_30 = arith.constant 0 : index
    %46 = memref.load %arg6[%c0_29, %c0_30] : memref<1x1xf32, #tpu.memory_space<smem>>
    %c0_31 = arith.constant 0 : index
    %c0_32 = arith.constant 0 : index
    %c0_33 = arith.constant 0 : index
    %47 = vector.load %arg8[%c0_31, %c0_32, %c0_33] : memref<2x32x256xf32, #tpu.memory_space<vmem>>, vector<1x32x256xf32>
    %48 = vector.shape_cast %47 : vector<1x32x256xf32> to vector<32x256xf32>
    %49 = vector.broadcast %42 : vector<32x1xf32> to vector<32x256xf32>
    %50 = arith.mulf %48, %49 : vector<32x256xf32>
    %51 = vector.broadcast %45 : vector<32x1xf32> to vector<32x256xf32>
    %52 = arith.addf %50, %51 : vector<32x256xf32>
    %cst_34 = arith.constant 0.000000e+00 : f32
    %53 = vector.broadcast %cst_34 : f32 to vector<32x256xf32>
    %54 = arith.maximumf %52, %53 : vector<32x256xf32>
    %c0_35 = arith.constant 0 : index
    %c0_36 = arith.constant 0 : index
    %55 = vector.load %arg5[%c0_35, %c0_36] : memref<32x1xf32, #tpu.memory_space<vmem>>, vector<32x1xf32>
    %56 = vector.broadcast %55 : vector<32x1xf32> to vector<32x256xf32>
    %57 = arith.mulf %56, %54 : vector<32x256xf32>
    %cst_37 = arith.constant dense<0.000000e+00> : vector<256xf32>
    %58 = vector.multi_reduction <add>, %57, %cst_37 [0] : vector<32x256xf32> to vector<256xf32>
    %59 = vector.shape_cast %58 : vector<256xf32> to vector<1x256xf32>
    %60 = vector.broadcast %46 : f32 to vector<1x256xf32>
    %61 = arith.addf %59, %60 : vector<1x256xf32>
    %cst_38 = arith.constant 2.000000e+01 : f32
    %62 = vector.broadcast %cst_38 : f32 to vector<1x256xf32>
    %63 = arith.cmpf ogt, %61, %62 : vector<1x256xf32>
    %cst_39 = arith.constant 2.000000e+01 : f32
    %64 = vector.broadcast %cst_39 : f32 to vector<1x256xf32>
    %65 = arith.minimumf %61, %64 : vector<1x256xf32>
    %66 = math.exp %65 : vector<1x256xf32>
    %67 = math.log1p %66 : vector<1x256xf32>
    %68 = arith.select %63, %61, %67 : vector<1x256xi1>, vector<1x256xf32>
    %c0_40 = arith.constant 0 : index
    %c0_41 = arith.constant 0 : index
    %c0_42 = arith.constant 0 : index
    %69 = vector.load %arg7[%c0_40, %c0_41, %c0_42] : memref<2x1x256xf32, #tpu.memory_space<vmem>>, vector<1x1x256xf32>
    %70 = vector.shape_cast %69 : vector<1x1x256xf32> to vector<1x256xf32>
    %71 = vector.shape_cast %68 : vector<1x256xf32> to vector<1x1x256xf32>
    tpu.vector_store %arg7[%c0_40, %c0_41, %c0_42], %71 {strides = array<i32>} : memref<2x1x256xf32, #tpu.memory_space<vmem>>, vector<1x1x256xf32>,
    %c1_43 = arith.constant 1 : index
    %c0_44 = arith.constant 0 : index
    %c0_45 = arith.constant 0 : index
    %72 = vector.load %arg8[%c1_43, %c0_44, %c0_45] : memref<2x32x256xf32, #tpu.memory_space<vmem>>, vector<1x32x256xf32>
    %73 = vector.shape_cast %72 : vector<1x32x256xf32> to vector<32x256xf32>
    %74 = vector.broadcast %42 : vector<32x1xf32> to vector<32x256xf32>
    %75 = arith.mulf %73, %74 : vector<32x256xf32>
    %76 = vector.broadcast %45 : vector<32x1xf32> to vector<32x256xf32>
    %77 = arith.addf %75, %76 : vector<32x256xf32>
    %cst_46 = arith.constant 0.000000e+00 : f32
    %78 = vector.broadcast %cst_46 : f32 to vector<32x256xf32>
    %79 = arith.maximumf %77, %78 : vector<32x256xf32>
    %c0_47 = arith.constant 0 : index
    %c0_48 = arith.constant 0 : index
    %80 = vector.load %arg5[%c0_47, %c0_48] : memref<32x1xf32, #tpu.memory_space<vmem>>, vector<32x1xf32>
    %81 = vector.broadcast %80 : vector<32x1xf32> to vector<32x256xf32>
    %82 = arith.mulf %81, %79 : vector<32x256xf32>
    %cst_49 = arith.constant dense<0.000000e+00> : vector<256xf32>
    %83 = vector.multi_reduction <add>, %82, %cst_49 [0] : vector<32x256xf32> to vector<256xf32>
    %84 = vector.shape_cast %83 : vector<256xf32> to vector<1x256xf32>
    %85 = vector.broadcast %46 : f32 to vector<1x256xf32>
    %86 = arith.addf %84, %85 : vector<1x256xf32>
    %cst_50 = arith.constant 2.000000e+01 : f32
    %87 = vector.broadcast %cst_50 : f32 to vector<1x256xf32>
    %88 = arith.cmpf ogt, %86, %87 : vector<1x256xf32>
    %cst_51 = arith.constant 2.000000e+01 : f32
    %89 = vector.broadcast %cst_51 : f32 to vector<1x256xf32>
    %90 = arith.minimumf %86, %89 : vector<1x256xf32>
    %91 = math.exp %90 : vector<1x256xf32>
    %92 = math.log1p %91 : vector<1x256xf32>
    %93 = arith.select %88, %86, %92 : vector<1x256xi1>, vector<1x256xf32>
    %c1_52 = arith.constant 1 : index
    %c0_53 = arith.constant 0 : index
    %c0_54 = arith.constant 0 : index
    %94 = vector.load %arg7[%c1_52, %c0_53, %c0_54] : memref<2x1x256xf32, #tpu.memory_space<vmem>>, vector<1x1x256xf32>
    %95 = vector.shape_cast %94 : vector<1x1x256xf32> to vector<1x256xf32>
    %96 = vector.shape_cast %93 : vector<1x256xf32> to vector<1x1x256xf32>
    tpu.vector_store %arg7[%c1_52, %c0_53, %c0_54], %96 {strides = array<i32>} : memref<2x1x256xf32, #tpu.memory_space<vmem>>, vector<1x1x256xf32>,
    return
  }
  func.func @transform_0(%arg0: i32) -> (i32, i32, i32) {
    %c0_i32 = arith.constant 0 : i32
    %c0_i32_0 = arith.constant 0 : i32
    %c0_i32_1 = arith.constant 0 : i32
    %c0_i32_2 = arith.constant 0 : i32
    return %c0_i32, %c0_i32_0, %c0_i32_1 : i32, i32, i32
  }
  func.func @transform_1(%arg0: i32) -> (i32, i32) {
    %c0_i32 = arith.constant 0 : i32
    %c0_i32_0 = arith.constant 0 : i32
    %c0_i32_1 = arith.constant 0 : i32
    return %c0_i32, %c0_i32_0 : i32, i32
  }
  func.func @transform_2(%arg0: i32) -> (i32, i32) {
    %c0_i32 = arith.constant 0 : i32
    %c0_i32_0 = arith.constant 0 : i32
    %c0_i32_1 = arith.constant 0 : i32
    return %c0_i32, %c0_i32_0 : i32, i32
  }
  func.func @transform_3(%arg0: i32) -> (i32, i32) {
    %c0_i32 = arith.constant 0 : i32
    %c0_i32_0 = arith.constant 0 : i32
    %c0_i32_1 = arith.constant 0 : i32
    return %c0_i32, %c0_i32_0 : i32, i32
  }
  func.func @transform_4(%arg0: i32) -> (i32, i32) {
    %c0_i32 = arith.constant 0 : i32
    %c0_i32_0 = arith.constant 0 : i32
    %c0_i32_1 = arith.constant 0 : i32
    return %c0_i32, %c0_i32_0 : i32, i32
  }
  func.func @transform_5(%arg0: i32) -> (i32, i32) {
    %c0_i32 = arith.constant 0 : i32
    %c0_i32_0 = arith.constant 0 : i32
    %c0_i32_1 = arith.constant 0 : i32
    return %c0_i32, %c0_i32_0 : i32, i32
  }
  func.func @transform_6(%arg0: i32) -> (i32, i32, i32) {
    %c0_i32 = arith.constant 0 : i32
    %c0_i32_0 = arith.constant 0 : i32
    %c0_i32_1 = arith.constant 0 : i32
    %c0_i32_2 = arith.constant 0 : i32
    return %c0_i32, %c0_i32_0, %c0_i32_1 : i32, i32, i32
  }
}

</mosaic_0001>

<llo_original>
// kernel: tpu_custom_call.1
$region0: #{tpu_custom_call.1}
  #allocation0 [shape = 'u32[]', space=smem, size = 0x4, offset = 0x4, fixed_abs, tag = 'smem constant byte address 0x4 - core index']
  #allocation1 [shape = 'u32[72,128]{1,0:T(1,128)}', space=vmem, size = 0x9000, scoped, tag = 'internal scratch']
  #allocation2 [shape = 'f32[2,32,256]{2,1,0:T(8,128)}', space=vmem, size = 0x10000, scoped, tag = 'scratch operand']
  #allocation3 [shape = 'f32[1,1]{1,0:T(1,128)S(6)}', space=smem, size = 0x200, scoped, tag = 'scoped memory for tpu_custom_call.1']
  %s0 = inlined_call_operand.hbm [shape: f32[2,32,256], index: 0, kind: input, shape index: {}]
  %s1 = inlined_call_operand.vmem [shape: f32[32,32], index: 1, kind: input, shape index: {}]
  %s2 = inlined_call_operand.vmem [shape: f32[32,1], index: 2, kind: input, shape index: {}]
  %s3 = inlined_call_operand.vmem [shape: f32[32,1], index: 3, kind: input, shape index: {}]
  %s4 = inlined_call_operand.vmem [shape: f32[32,1], index: 4, kind: input, shape index: {}]
  %s5 = inlined_call_operand.<no memory space> [shape: f32[1,1], index: 5, kind: input, shape index: {}]
  %s6 = inlined_call_operand.hbm [shape: f32[2,1,256], index: 6, kind: output, shape index: {}]
  %s7 = sld [smem:[#allocation0]]
  $region38: #{tpu_custom_call.1} parent=0
    _
  %s9 = ssub.s32 1, %s7
  %s10 = scalar_select 0, %s9, %s7
  %11 = sst [smem:[#allocation3]] %s5
  $region1: #{tpu_custom_call.1} parent=0
    #allocation4 [shape = 'u8[65536]{0}', space=vmem, size = 0x10000, scoped, tag = 'input window, operand 0, single buffered']
    #allocation5 [shape = 's32[1]{0}', space=sflag, size = 0x4, scoped, tag = 'scoped memory for tpu_custom_call.1']
    #allocation6 [shape = 's32[1]{0}', space=sflag, size = 0x4, scoped, tag = 'scoped memory for tpu_custom_call.1']
    #allocation7 [shape = 'u8[2048]{0}', space=vmem, size = 0x800, scoped, tag = 'output window, operand 0, single buffered']
    %12 = vsyncpa [#allocation5], 0
    %13 = vsyncpa [#allocation6], 0
    // Predicated region
    $region2: #{tpu_custom_call.1} parent=1 // pred_check
      _
    $region3: #{tpu_custom_call.1} parent=1 // pred_check_branch
      %15 = sbr.rel (0) target = $region5
    $region4: #{tpu_custom_call.1} parent=1 // pred_region
      %17 = vsyncadd [#allocation5], 0
      %s18 = sshll.u32 %s0, 4
      %s19 = int_to_ptr.hbm [resolvable:$true] %s18
      %s20 = sshll.u32 [#allocation4], 4
      %s21 = int_to_ptr.vmem [resolvable:$true] %s20
      %26 = dma.hbm_to_vmem [thread:$0]  %s19, 2048, %s21, [#allocation5], 256, 256, 16
    $region5: #{tpu_custom_call.1} parent=1 // pred_fallthru
      _
    // Predicated region
    $region6: #{tpu_custom_call.1} parent=1 // pred_check
      _
    $region7: #{tpu_custom_call.1} parent=1 // pred_check_branch
      %28 = sbr.rel (0) target = $region9
    $region8: #{tpu_custom_call.1} parent=1 // pred_region
      _
    $region9: #{tpu_custom_call.1} parent=1 // pred_fallthru
      _
    // Predicated region
    $region10: #{tpu_custom_call.1} parent=1 // pred_check
      _
    $region11: #{tpu_custom_call.1} parent=1 // pred_check_branch
      %30 = sbr.rel (0) target = $region13
    $region12: #{tpu_custom_call.1} parent=1 // pred_region
      _
    $region13: #{tpu_custom_call.1} parent=1 // pred_fallthru
      _
    // Predicated region
    $region14: #{tpu_custom_call.1} parent=1 // pred_check
      _
    $region15: #{tpu_custom_call.1} parent=1 // pred_check_branch
      %32 = sbr.rel (0) target = $region17
    $region16: #{tpu_custom_call.1} parent=1 // pred_region
      _
    $region17: #{tpu_custom_call.1} parent=1 // pred_fallthru
      _
    // Predicated region
    $region18: #{tpu_custom_call.1} parent=1 // pred_check
      _
    $region19: #{tpu_custom_call.1} parent=1 // pred_check_branch
      %34 = sbr.rel (0) target = $region21
    $region20: #{tpu_custom_call.1} parent=1 // pred_region
      _
    $region21: #{tpu_custom_call.1} parent=1 // pred_fallthru
      _
    // Predicated region
    $region22: #{tpu_custom_call.1} parent=1 // pred_check
      _
    $region23: #{tpu_custom_call.1} parent=1 // pred_check_branch
      %36 = sbr.rel (0) target = $region25
    $region24: #{tpu_custom_call.1} parent=1 // pred_region
      _
    $region25: #{tpu_custom_call.1} parent=1 // pred_fallthru
      _
    // Predicated region
    $region26: #{tpu_custom_call.1} parent=1 // pred_check
      _
    $region27: #{tpu_custom_call.1} parent=1 // pred_check_branch
      %38 = sbr.rel (0) target = $region29
    $region28: #{tpu_custom_call.1} parent=1 // pred_region
      %40 = dma.done [#allocation5], 2048
    $region29: #{tpu_custom_call.1} parent=1 // pred_fallthru
      _
    %v41 = vld [vmem:[%s1] sm:$0xff]
    %v42 = vld [vmem:[%s1 + $0x8] sm:$0xff]
    %v43 = vld [vmem:[%s1 + $0x10] sm:$0xff]
    %v44 = vld [vmem:[%s1 + $0x18] sm:$0xff]
    %v45 = vld [vmem:[#allocation4] sm:$0xff]
    %v46 = vld [vmem:[#allocation4 + $0x8] sm:$0xff]
    %v47 = vld [vmem:[#allocation4 + $0x10] sm:$0xff]
    %v48 = vld [vmem:[#allocation4 + $0x18] sm:$0xff]
    %v49 = vld [vmem:[#allocation4 + $0x20] sm:$0xff]
    %v50 = vld [vmem:[#allocation4 + $0x28] sm:$0xff]
    %v51 = vld [vmem:[#allocation4 + $0x30] sm:$0xff]
    %v52 = vld [vmem:[#allocation4 + $0x38] sm:$0xff]
    %vm53 = vcmask 261120
    %v55 = vsel %vm53, %v41, 0
    %v58 = vsel %vm53, %v42, 0
    %v61 = vsel %vm53, %v43, 0
    %v64 = vsel %vm53, %v44, 0
    %66 = vmatpush.msra.mxu0 0.0
    %67 = vmatpush.msra.mxu0 0.0
    %68 = vmatpush.msra.mxu0 0.0
    %69 = vmatpush.msra.mxu0 0.0
    %70 = vmatpush.msra.mxu0 0.0
    %71 = vmatpush.msra.mxu0 0.0
    %72 = vmatpush.msra.mxu0 0.0
    %73 = vmatpush.msra.mxu0 0.0
    %74 = vmatpush.msra.mxu0 0.0
    %75 = vmatpush.msra.mxu0 0.0
    %76 = vmatpush.msra.mxu0 0.0
    %77 = vmatpush.msra.mxu0 0.0
    %78 = vmatpush.msra.mxu0 %v51
    %79 = vmatpush.msra.mxu0 %v49
    %80 = vmatpush.msra.mxu0 %v47
    %81 = vmatpush.msra.mxu0 %v45
    %82 = vmatmul.f32.gmra.mxu0 %v55
    %v83 = vpop.f32.mrf.mxu0
    %v84 = vadd.f32 0.0, %v83
    %85 = vmatmul.f32.gmra.mxu0 %v58
    %v86 = vpop.f32.mrf.mxu0
    %v87 = vadd.f32 0.0, %v86
    %88 = vmatmul.f32.gmra.mxu0 %v61
    %v89 = vpop.f32.mrf.mxu0
    %v90 = vadd.f32 0.0, %v89
    %91 = vmatmul.f32.gmra.mxu0 %v64
    %v92 = vpop.f32.mrf.mxu0
    %v93 = vadd.f32 0.0, %v92
    %94 = vdwg.mxu0
    %95 = vmatpush.msra.mxu0 0.0
    %96 = vmatpush.msra.mxu0 0.0
    %97 = vmatpush.msra.mxu0 0.0
    %98 = vmatpush.msra.mxu0 0.0
    %99 = vmatpush.msra.mxu0 0.0
    %100 = vmatpush.msra.mxu0 0.0
    %101 = vmatpush.msra.mxu0 0.0
    %102 = vmatpush.msra.mxu0 0.0
    %103 = vmatpush.msra.mxu0 0.0
    %104 = vmatpush.msra.mxu0 0.0
    %105 = vmatpush.msra.mxu0 0.0
    %106 = vmatpush.msra.mxu0 0.0
    %107 = vmatpush.msra.mxu0 %v52
    %108 = vmatpush.msra.mxu0 %v50
    %109 = vmatpush.msra.mxu0 %v48
    %110 = vmatpush.msra.mxu0 %v46
    %111 = vmatmul.f32.gmra.mxu0 %v55
    %v112 = vpop.f32.mrf.mxu0
    %v113 = vadd.f32 0.0, %v112
    %114 = vmatmul.f32.gmra.mxu0 %v58
    %v115 = vpop.f32.mrf.mxu0
    %v116 = vadd.f32 0.0, %v115
    %117 = vmatmul.f32.gmra.mxu0 %v61
    %v118 = vpop.f32.mrf.mxu0
    %v119 = vadd.f32 0.0, %v118
    %120 = vmatmul.f32.gmra.mxu0 %v64
    %v121 = vpop.f32.mrf.mxu0
    %v122 = vadd.f32 0.0, %v121
    %123 = vdwg.mxu0
    %124 = vst [vmem:[#allocation2] sm:$0xff] %v84
    %125 = vst [vmem:[#allocation2 + $0x8] sm:$0xff] %v113
    %126 = vst [vmem:[#allocation2 + $0x10] sm:$0xff] %v87
    %127 = vst [vmem:[#allocation2 + $0x18] sm:$0xff] %v116
    %128 = vst [vmem:[#allocation2 + $0x20] sm:$0xff] %v90
    %129 = vst [vmem:[#allocation2 + $0x28] sm:$0xff] %v119
    %130 = vst [vmem:[#allocation2 + $0x30] sm:$0xff] %v93
    %131 = vst [vmem:[#allocation2 + $0x38] sm:$0xff] %v122
    %v132 = vadd.f32 %v84, %v113
    %133 = vadd.xlane.f32.xlu0 %v132
    %v134 = vpop.xlane.xlu0 %133
    %v135 = vadd.f32 %v87, %v116
    %136 = vadd.xlane.f32.xlu0 %v135
    %v137 = vpop.xlane.xlu0 %136
    %v138 = vadd.f32 %v90, %v119
    %139 = vadd.xlane.f32.xlu0 %v138
    %v140 = vpop.xlane.xlu0 %139
    %v141 = vadd.f32 %v93, %v122
    %142 = vadd.xlane.f32.xlu0 %v141
    %v143 = vpop.xlane.xlu0 %142
    %v144 = vadd.f32 %v134, 0.0
    %v145 = vadd.f32 %v137, 0.0
    %v146 = vadd.f32 %v140, 0.0
    %v147 = vadd.f32 %v143, 0.0
    %v148 = vmul.f32 %v84, %v84
    %v149 = vmul.f32 %v113, %v113
    %v150 = vmul.f32 %v87, %v87
    %v151 = vmul.f32 %v116, %v116
    %v152 = vmul.f32 %v90, %v90
    %v153 = vmul.f32 %v119, %v119
    %v154 = vmul.f32 %v93, %v93
    %v155 = vmul.f32 %v122, %v122
    %v156 = vadd.f32 %v148, %v149
    %157 = vadd.xlane.f32.xlu0 %v156
    %v158 = vpop.xlane.xlu0 %157
    %v159 = vadd.f32 %v150, %v151
    %160 = vadd.xlane.f32.xlu0 %v159
    %v161 = vpop.xlane.xlu0 %160
    %v162 = vadd.f32 %v152, %v153
    %163 = vadd.xlane.f32.xlu0 %v162
    %v164 = vpop.xlane.xlu0 %163
    %v165 = vadd.f32 %v154, %v155
    %166 = vadd.xlane.f32.xlu0 %v165
    %v167 = vpop.xlane.xlu0 %166
    %v168 = vadd.f32 %v158, 0.0
    %v169 = vadd.f32 %v161, 0.0
    %v170 = vadd.f32 %v164, 0.0
    %v171 = vadd.f32 %v167, 0.0
    %v172 = vld [vmem:[%s1] sm:$0xff]
    %v173 = vld [vmem:[%s1 + $0x8] sm:$0xff]
    %v174 = vld [vmem:[%s1 + $0x10] sm:$0xff]
    %v175 = vld [vmem:[%s1 + $0x18] sm:$0xff]
    %s176 = scalar_lea.vmem [#allocation4], 64
    %v177 = vld [vmem:[%s176] sm:$0xff]
    %v178 = vld [vmem:[%s176 + $0x8] sm:$0xff]
    %v179 = vld [vmem:[%s176 + $0x10] sm:$0xff]
    %v180 = vld [vmem:[%s176 + $0x18] sm:$0xff]
    %v181 = vld [vmem:[%s176 + $0x20] sm:$0xff]
    %v182 = vld [vmem:[%s176 + $0x28] sm:$0xff]
    %v183 = vld [vmem:[%s176 + $0x30] sm:$0xff]
    %v184 = vld [vmem:[%s176 + $0x38] sm:$0xff]
    %v186 = vsel %vm53, %v172, 0
    %v189 = vsel %vm53, %v173, 0
    %v192 = vsel %vm53, %v174, 0
    %v195 = vsel %vm53, %v175, 0
    %197 = vmatpush.msra.mxu0 0.0
    %198 = vmatpush.msra.mxu0 0.0
    %199 = vmatpush.msra.mxu0 0.0
    %200 = vmatpush.msra.mxu0 0.0
    %201 = vmatpush.msra.mxu0 0.0
    %202 = vmatpush.msra.mxu0 0.0
    %203 = vmatpush.msra.mxu0 0.0
    %204 = vmatpush.msra.mxu0 0.0
    %205 = vmatpush.msra.mxu0 0.0
    %206 = vmatpush.msra.mxu0 0.0
    %207 = vmatpush.msra.mxu0 0.0
    %208 = vmatpush.msra.mxu0 0.0
    %209 = vmatpush.msra.mxu0 %v183
    %210 = vmatpush.msra.mxu0 %v181
    %211 = vmatpush.msra.mxu0 %v179
    %212 = vmatpush.msra.mxu0 %v177
    %213 = vmatmul.f32.gmra.mxu0 %v186
    %v214 = vpop.f32.mrf.mxu0
    %v215 = vadd.f32 0.0, %v214
    %216 = vmatmul.f32.gmra.mxu0 %v189
    %v217 = vpop.f32.mrf.mxu0
    %v218 = vadd.f32 0.0, %v217
    %219 = vmatmul.f32.gmra.mxu0 %v192
    %v220 = vpop.f32.mrf.mxu0
    %v221 = vadd.f32 0.0, %v220
    %222 = vmatmul.f32.gmra.mxu0 %v195
    %v223 = vpop.f32.mrf.mxu0
    %v224 = vadd.f32 0.0, %v223
    %225 = vdwg.mxu0
    %226 = vmatpush.msra.mxu0 0.0
    %227 = vmatpush.msra.mxu0 0.0
    %228 = vmatpush.msra.mxu0 0.0
    %229 = vmatpush.msra.mxu0 0.0
    %230 = vmatpush.msra.mxu0 0.0
    %231 = vmatpush.msra.mxu0 0.0
    %232 = vmatpush.msra.mxu0 0.0
    %233 = vmatpush.msra.mxu0 0.0
    %234 = vmatpush.msra.mxu0 0.0
    %235 = vmatpush.msra.mxu0 0.0
    %236 = vmatpush.msra.mxu0 0.0
    %237 = vmatpush.msra.mxu0 0.0
    %238 = vmatpush.msra.mxu0 %v184
    %239 = vmatpush.msra.mxu0 %v182
    %240 = vmatpush.msra.mxu0 %v180
    %241 = vmatpush.msra.mxu0 %v178
    %242 = vmatmul.f32.gmra.mxu0 %v186
    %v243 = vpop.f32.mrf.mxu0
    %v244 = vadd.f32 0.0, %v243
    %245 = vmatmul.f32.gmra.mxu0 %v189
    %v246 = vpop.f32.mrf.mxu0
    %v247 = vadd.f32 0.0, %v246
    %248 = vmatmul.f32.gmra.mxu0 %v192
    %v249 = vpop.f32.mrf.mxu0
    %v250 = vadd.f32 0.0, %v249
    %251 = vmatmul.f32.gmra.mxu0 %v195
    %v252 = vpop.f32.mrf.mxu0
    %v253 = vadd.f32 0.0, %v252
    %254 = vdwg.mxu0
    %s255 = scalar_lea.vmem [#allocation2], 64
    %256 = vst [vmem:[%s255] sm:$0xff] %v215
    %257 = vst [vmem:[%s255 + $0x8] sm:$0xff] %v244
    %258 = vst [vmem:[%s255 + $0x10] sm:$0xff] %v218
    %259 = vst [vmem:[%s255 + $0x18] sm:$0xff] %v247
    %260 = vst [vmem:[%s255 + $0x20] sm:$0xff] %v221
    %261 = vst [vmem:[%s255 + $0x28] sm:$0xff] %v250
    %262 = vst [vmem:[%s255 + $0x30] sm:$0xff] %v224
    %263 = vst [vmem:[%s255 + $0x38] sm:$0xff] %v253
    %v264 = vadd.f32 %v215, %v244
    %265 = vadd.xlane.f32.xlu0 %v264
    %v266 = vpop.xlane.xlu0 %265
    %v267 = vadd.f32 %v218, %v247
    %268 = vadd.xlane.f32.xlu0 %v267
    %v269 = vpop.xlane.xlu0 %268
    %v270 = vadd.f32 %v221, %v250
    %271 = vadd.xlane.f32.xlu0 %v270
    %v272 = vpop.xlane.xlu0 %271
    %v273 = vadd.f32 %v224, %v253
    %274 = vadd.xlane.f32.xlu0 %v273
    %v275 = vpop.xlane.xlu0 %274
    %v276 = vadd.f32 %v144, %v266
    %v277 = vadd.f32 %v145, %v269
    %v278 = vadd.f32 %v146, %v272
    %v279 = vadd.f32 %v147, %v275
    %v280 = vmul.f32 %v215, %v215
    %v281 = vmul.f32 %v244, %v244
    %v282 = vmul.f32 %v218, %v218
    %v283 = vmul.f32 %v247, %v247
    %v284 = vmul.f32 %v221, %v221
    %v285 = vmul.f32 %v250, %v250
    %v286 = vmul.f32 %v224, %v224
    %v287 = vmul.f32 %v253, %v253
    %v288 = vadd.f32 %v280, %v281
    %289 = vadd.xlane.f32.xlu0 %v288
    %v290 = vpop.xlane.xlu0 %289
    %v291 = vadd.f32 %v282, %v283
    %292 = vadd.xlane.f32.xlu0 %v291
    %v293 = vpop.xlane.xlu0 %292
    %v294 = vadd.f32 %v284, %v285
    %295 = vadd.xlane.f32.xlu0 %v294
    %v296 = vpop.xlane.xlu0 %295
    %v297 = vadd.f32 %v286, %v287
    %298 = vadd.xlane.f32.xlu0 %v297
    %v299 = vpop.xlane.xlu0 %298
    %v300 = vadd.f32 %v168, %v290
    %v301 = vadd.f32 %v169, %v293
    %v302 = vadd.f32 %v170, %v296
    %v303 = vadd.f32 %v171, %v299
    %v304 = vmul.f32 %v276, 0.001953125
    %v305 = vmul.f32 %v277, 0.001953125
    %v306 = vmul.f32 %v278, 0.001953125
    %v307 = vmul.f32 %v279, 0.001953125
    %v308 = vmul.f32 %v300, 0.001953125
    %v309 = vmul.f32 %v301, 0.001953125
    %v310 = vmul.f32 %v302, 0.001953125
    %v311 = vmul.f32 %v303, 0.001953125
    %v312 = vmul.f32 %v304, %v304
    %v313 = vmul.f32 %v305, %v305
    %v314 = vmul.f32 %v306, %v306
    %v315 = vmul.f32 %v307, %v307
    %v316 = vsub.f32 %v308, %v312
    %v317 = vsub.f32 %v309, %v313
    %v318 = vsub.f32 %v310, %v314
    %v319 = vsub.f32 %v311, %v315
    %v320 = vmax.f32 %v316, 0.0
    %v321 = vmax.f32 %v317, 0.0
    %v322 = vmax.f32 %v318, 0.0
    %v323 = vmax.f32 %v319, 0.0
    %v324 = vld [vmem:[%s2] sm:$0xff]
    %v325 = vld [vmem:[%s2 + $0x8] sm:$0xff]
    %v326 = vld [vmem:[%s2 + $0x10] sm:$0xff]
    %v327 = vld [vmem:[%s2 + $0x18] sm:$0xff]
    %v328 = vadd.f32 %v320, 1e-05
    %v329 = vadd.f32 %v321, 1e-05
    %v330 = vadd.f32 %v322, 1e-05
    %v331 = vadd.f32 %v323, 1e-05
    %v332 = vrsqrt.pop %v328
    %v333 = vmul.f32 %v332, %v328
    %v334 = vmul.f32 %v333, %v332
    %v335 = vmul.f32 0.5, %v334
    %v336 = vsub.f32 1.5, %v335
    %v337 = vmul.f32 %v332, %v336
    %vm338 = vweird.f32 %v328
    %vm339 = vweird.f32 %v332
    %vm340 = vmor %vm338, %vm339
    %v341 = vsel %vm340, %v332, %v337
    %v342 = vrsqrt.pop %v329
    %v343 = vmul.f32 %v342, %v329
    %v344 = vmul.f32 %v343, %v342
    %v345 = vmul.f32 0.5, %v344
    %v346 = vsub.f32 1.5, %v345
    %v347 = vmul.f32 %v342, %v346
    %vm348 = vweird.f32 %v329
    %vm349 = vweird.f32 %v342
    %vm350 = vmor %vm348, %vm349
    %v351 = vsel %vm350, %v342, %v347
    %v352 = vrsqrt.pop %v330
    %v353 = vmul.f32 %v352, %v330
    %v354 = vmul.f32 %v353, %v352
    %v355 = vmul.f32 0.5, %v354
    %v356 = vsub.f32 1.5, %v355
    %v357 = vmul.f32 %v352, %v356
    %vm358 = vweird.f32 %v330
    %vm359 = vweird.f32 %v352
    %vm360 = vmor %vm358, %vm359
    %v361 = vsel %vm360, %v352, %v357
    %v362 = vrsqrt.pop %v331
    %v363 = vmul.f32 %v362, %v331
    %v364 = vmul.f32 %v363, %v362
    %v365 = vmul.f32 0.5, %v364
    %v366 = vsub.f32 1.5, %v365
    %v367 = vmul.f32 %v362, %v366
    %vm368 = vweird.f32 %v331
    %vm369 = vweird.f32 %v362
    %vm370 = vmor %vm368, %vm369
    %v371 = vsel %vm370, %v362, %v367
    %v372 = vmul.f32 %v324, %v341
    %v373 = vmul.f32 %v325, %v351
    %v374 = vmul.f32 %v326, %v361
    %v375 = vmul.f32 %v327, %v371
    %v376 = vld [vmem:[%s3] sm:$0xff]
    %v377 = vld [vmem:[%s3 + $0x8] sm:$0xff]
    %v378 = vld [vmem:[%s3 + $0x10] sm:$0xff]
    %v379 = vld [vmem:[%s3 + $0x18] sm:$0xff]
    %v380 = vmul.f32 %v304, %v372
    %v381 = vmul.f32 %v305, %v373
    %v382 = vmul.f32 %v306, %v374
    %v383 = vmul.f32 %v307, %v375
    %v384 = vsub.f32 %v376, %v380
    %v385 = vsub.f32 %v377, %v381
    %v386 = vsub.f32 %v378, %v382
    %v387 = vsub.f32 %v379, %v383
    %s388 = sld [smem:[#allocation3]]
    %v389 = vld [vmem:[#allocation2] sm:$0xff]
    %v390 = vld [vmem:[#allocation2 + $0x8] sm:$0xff]
    %v391 = vld [vmem:[#allocation2 + $0x10] sm:$0xff]
    %v392 = vld [vmem:[#allocation2 + $0x18] sm:$0xff]
    %v393 = vld [vmem:[#allocation2 + $0x20] sm:$0xff]
    %v394 = vld [vmem:[#allocation2 + $0x28] sm:$0xff]
    %v395 = vld [vmem:[#allocation2 + $0x30] sm:$0xff]
    %v396 = vld [vmem:[#allocation2 + $0x38] sm:$0xff]
    %398 = vset.pattern.permute.xlu0 0
    %399 = vperm.xlu0 %398, %v372
    %v400 = vpop.permute.xlu0 %399
    %403 = vset.pattern.permute.xlu0 0
    %404 = vperm.xlu0 %403, %v373
    %v405 = vpop.permute.xlu0 %404
    %408 = vset.pattern.permute.xlu0 0
    %409 = vperm.xlu0 %408, %v374
    %v410 = vpop.permute.xlu0 %409
    %413 = vset.pattern.permute.xlu0 0
    %414 = vperm.xlu0 %413, %v375
    %v415 = vpop.permute.xlu0 %414
    %v417 = vmul.f32 %v389, %v400
    %v418 = vmul.f32 %v390, %v400
    %v419 = vmul.f32 %v391, %v405
    %v420 = vmul.f32 %v392, %v405
    %v421 = vmul.f32 %v393, %v410
    %v422 = vmul.f32 %v394, %v410
    %v423 = vmul.f32 %v395, %v415
    %v424 = vmul.f32 %v396, %v415
    %426 = vset.pattern.permute.xlu0 0
    %427 = vperm.xlu0 %426, %v384
    %v428 = vpop.permute.xlu0 %427
    %431 = vset.pattern.permute.xlu0 0
    %432 = vperm.xlu0 %431, %v385
    %v433 = vpop.permute.xlu0 %432
    %436 = vset.pattern.permute.xlu0 0
    %437 = vperm.xlu0 %436, %v386
    %v438 = vpop.permute.xlu0 %437
    %441 = vset.pattern.permute.xlu0 0
    %442 = vperm.xlu0 %441, %v387
    %v443 = vpop.permute.xlu0 %442
    %v445 = vadd.f32 %v417, %v428
    %v446 = vadd.f32 %v418, %v428
    %v447 = vadd.f32 %v419, %v433
    %v448 = vadd.f32 %v420, %v433
    %v449 = vadd.f32 %v421, %v438
    %v450 = vadd.f32 %v422, %v438
    %v451 = vadd.f32 %v423, %v443
    %v452 = vadd.f32 %v424, %v443
    %v453 = vmax.f32 %v445, 0.0
    %v454 = vmax.f32 %v446, 0.0
    %v455 = vmax.f32 %v447, 0.0
    %v456 = vmax.f32 %v448, 0.0
    %v457 = vmax.f32 %v449, 0.0
    %v458 = vmax.f32 %v450, 0.0
    %v459 = vmax.f32 %v451, 0.0
    %v460 = vmax.f32 %v452, 0.0
    %v461 = vld [vmem:[%s4] sm:$0xff]
    %v462 = vld [vmem:[%s4 + $0x8] sm:$0xff]
    %v463 = vld [vmem:[%s4 + $0x10] sm:$0xff]
    %v464 = vld [vmem:[%s4 + $0x18] sm:$0xff]
    %466 = vset.pattern.permute.xlu0 0
    %467 = vperm.xlu0 %466, %v461
    %v468 = vpop.permute.xlu0 %467
    %471 = vset.pattern.permute.xlu0 0
    %472 = vperm.xlu0 %471, %v462
    %v473 = vpop.permute.xlu0 %472
    %476 = vset.pattern.permute.xlu0 0
    %477 = vperm.xlu0 %476, %v463
    %v478 = vpop.permute.xlu0 %477
    %481 = vset.pattern.permute.xlu0 0
    %482 = vperm.xlu0 %481, %v464
    %v483 = vpop.permute.xlu0 %482
    %v485 = vmul.f32 %v468, %v453
    %v486 = vmul.f32 %v468, %v454
    %v487 = vmul.f32 %v473, %v455
    %v488 = vmul.f32 %v473, %v456
    %v489 = vmul.f32 %v478, %v457
    %v490 = vmul.f32 %v478, %v458
    %v491 = vmul.f32 %v483, %v459
    %v492 = vmul.f32 %v483, %v460
    %v493 = vadd.f32 %v485, %v487
    %v494 = vadd.f32 %v493, %v489
    %v495 = vadd.f32 %v494, %v491
    %v496 = vrot.slane %v495, 4
    %v497 = vadd.f32 %v495, %v496
    %v498 = vrot.slane %v497, 2
    %v499 = vadd.f32 %v497, %v498
    %v500 = vrot.slane %v499, 1
    %v501 = vadd.f32 %v499, %v500
    %v502 = vadd.f32 %v486, %v488
    %v503 = vadd.f32 %v502, %v490
    %v504 = vadd.f32 %v503, %v492
    %v505 = vrot.slane %v504, 4
    %v506 = vadd.f32 %v504, %v505
    %v507 = vrot.slane %v506, 2
    %v508 = vadd.f32 %v506, %v507
    %v509 = vrot.slane %v508, 1
    %v510 = vadd.f32 %v508, %v509
    %v511 = vstv %s388
    %v512 = vadd.f32 %v501, %v511
    %v513 = vadd.f32 %v510, %v511
    %vm514 = vcmp.gt.f32.partialorder %v512, 20.0
    %vm515 = vcmp.gt.f32.partialorder %v513, 20.0
    %v516 = vmin.f32 %v512, 20.0
    %v517 = vmin.f32 %v513, 20.0
    %v518 = vmul.f32 %v516, 1.442695
    %v519 = vpow.pop %v518
    %v520 = vmul.f32 %v517, 1.442695
    %v521 = vpow.pop %v520
    %v522 = vadd.f32 %v519, 1.0
    %v523 = vlog2.pop %v522
    %v524 = vmul.f32 %v523, 0.6931472
    %v525 = vmul.f32 -0.5, %v519
    %v526 = vadd.f32 %v525, 1.0
    %v527 = vmul.f32 %v526, %v519
    %v528 = vand.u32 2147483647, %v519
    %vm529 = vcmp.lt.f32.partialorder %v528, 0.0004427343
    %v530 = vsel %vm529, %v527, %v524
    %v531 = vadd.f32 %v521, 1.0
    %v532 = vlog2.pop %v531
    %v533 = vmul.f32 %v532, 0.6931472
    %v534 = vmul.f32 -0.5, %v521
    %v535 = vadd.f32 %v534, 1.0
    %v536 = vmul.f32 %v535, %v521
    %v537 = vand.u32 2147483647, %v521
    %vm538 = vcmp.lt.f32.partialorder %v537, 0.0004427343
    %v539 = vsel %vm538, %v536, %v533
    %v540 = vsel %vm514, %v512, %v530
    %v541 = vsel %vm515, %v513, %v539
    %v544 = vrot.slane %v541, 7
    %vm545 = vcmask 1040384
    %v546 = vsel %vm545, %v540, %v544
    %v548 = vlaneseq
    %vm549 = vcmp.ge.s32.totalorder %v548, 0
    %vm550 = vcmp.lt.s32.totalorder %v548, 256
    %vm551 = vmand %vm549, %vm550
    %552 = vst.msk [vmem:[#allocation7] sm:$0x3] %vm551, %v546
    %v553 = vld [vmem:[%s255] sm:$0xff]
    %v554 = vld [vmem:[%s255 + $0x8] sm:$0xff]
    %v555 = vld [vmem:[%s255 + $0x10] sm:$0xff]
    %v556 = vld [vmem:[%s255 + $0x18] sm:$0xff]
    %v557 = vld [vmem:[%s255 + $0x20] sm:$0xff]
    %v558 = vld [vmem:[%s255 + $0x28] sm:$0xff]
    %v559 = vld [vmem:[%s255 + $0x30] sm:$0xff]
    %v560 = vld [vmem:[%s255 + $0x38] sm:$0xff]
    %v561 = vmul.f32 %v553, %v400
    %v562 = vmul.f32 %v554, %v400
    %v563 = vmul.f32 %v555, %v405
    %v564 = vmul.f32 %v556, %v405
    %v565 = vmul.f32 %v557, %v410
    %v566 = vmul.f32 %v558, %v410
    %v567 = vmul.f32 %v559, %v415
    %v568 = vmul.f32 %v560, %v415
    %v569 = vadd.f32 %v561, %v428
    %v570 = vadd.f32 %v562, %v428
    %v571 = vadd.f32 %v563, %v433
    %v572 = vadd.f32 %v564, %v433
    %v573 = vadd.f32 %v565, %v438
    %v574 = vadd.f32 %v566, %v438
    %v575 = vadd.f32 %v567, %v443
    %v576 = vadd.f32 %v568, %v443
    %v577 = vmax.f32 %v569, 0.0
    %v578 = vmax.f32 %v570, 0.0
    %v579 = vmax.f32 %v571, 0.0
    %v580 = vmax.f32 %v572, 0.0
    %v581 = vmax.f32 %v573, 0.0
    %v582 = vmax.f32 %v574, 0.0
    %v583 = vmax.f32 %v575, 0.0
    %v584 = vmax.f32 %v576, 0.0
    %v585 = vld [vmem:[%s4] sm:$0xff]
    %v586 = vld [vmem:[%s4 + $0x8] sm:$0xff]
    %v587 = vld [vmem:[%s4 + $0x10] sm:$0xff]
    %v588 = vld [vmem:[%s4 + $0x18] sm:$0xff]
    %590 = vset.pattern.permute.xlu0 0
    %591 = vperm.xlu0 %590, %v585
    %v592 = vpop.permute.xlu0 %591
    %595 = vset.pattern.permute.xlu0 0
    %596 = vperm.xlu0 %595, %v586
    %v597 = vpop.permute.xlu0 %596
    %600 = vset.pattern.permute.xlu0 0
    %601 = vperm.xlu0 %600, %v587
    %v602 = vpop.permute.xlu0 %601
    %605 = vset.pattern.permute.xlu0 0
    %606 = vperm.xlu0 %605, %v588
    %v607 = vpop.permute.xlu0 %606
    %v609 = vmul.f32 %v592, %v577
    %v610 = vmul.f32 %v592, %v578
    %v611 = vmul.f32 %v597, %v579
    %v612 = vmul.f32 %v597, %v580
    %v613 = vmul.f32 %v602, %v581
    %v614 = vmul.f32 %v602, %v582
    %v615 = vmul.f32 %v607, %v583
    %v616 = vmul.f32 %v607, %v584
    %v617 = vadd.f32 %v609, %v611
    %v618 = vadd.f32 %v617, %v613
    %v619 = vadd.f32 %v618, %v615
    %v620 = vrot.slane %v619, 4
    %v621 = vadd.f32 %v619, %v620
    %v622 = vrot.slane %v621, 2
    %v623 = vadd.f32 %v621, %v622
    %v624 = vrot.slane %v623, 1
    %v625 = vadd.f32 %v623, %v624
    %v626 = vadd.f32 %v610, %v612
    %v627 = vadd.f32 %v626, %v614
    %v628 = vadd.f32 %v627, %v616
    %v629 = vrot.slane %v628, 4
    %v630 = vadd.f32 %v628, %v629
    %v631 = vrot.slane %v630, 2
    %v632 = vadd.f32 %v630, %v631
    %v633 = vrot.slane %v632, 1
    %v634 = vadd.f32 %v632, %v633
    %v635 = vadd.f32 %v625, %v511
    %v636 = vadd.f32 %v634, %v511
    %vm637 = vcmp.gt.f32.partialorder %v635, 20.0
    %vm638 = vcmp.gt.f32.partialorder %v636, 20.0
    %v639 = vmin.f32 %v635, 20.0
    %v640 = vmin.f32 %v636, 20.0
    %v641 = vmul.f32 %v639, 1.442695
    %v642 = vpow.pop %v641
    %v643 = vmul.f32 %v640, 1.442695
    %v644 = vpow.pop %v643
    %v645 = vadd.f32 %v642, 1.0
    %v646 = vlog2.pop %v645
    %v647 = vmul.f32 %v646, 0.6931472
    %v648 = vmul.f32 -0.5, %v642
    %v649 = vadd.f32 %v648, 1.0
    %v650 = vmul.f32 %v649, %v642
    %v651 = vand.u32 2147483647, %v642
    %vm652 = vcmp.lt.f32.partialorder %v651, 0.0004427343
    %v653 = vsel %vm652, %v650, %v647
    %v654 = vadd.f32 %v644, 1.0
    %v655 = vlog2.pop %v654
    %v656 = vmul.f32 %v655, 0.6931472
    %v657 = vmul.f32 -0.5, %v644
    %v658 = vadd.f32 %v657, 1.0
    %v659 = vmul.f32 %v658, %v644
    %v660 = vand.u32 2147483647, %v644
    %vm661 = vcmp.lt.f32.partialorder %v660, 0.0004427343
    %v662 = vsel %vm661, %v659, %v656
    %v663 = vsel %vm637, %v635, %v653
    %v664 = vsel %vm638, %v636, %v662
    %v667 = vrot.slane %v664, 7
    %v668 = vsel %vm545, %v663, %v667
    %s670 = scalar_lea.vmem [#allocation7], 2
    %671 = vst.msk [vmem:[%s670] sm:$0x3] %vm551, %v668
    // Predicated region
    $region30: #{tpu_custom_call.1} parent=1 // pred_check
      _
    $region31: #{tpu_custom_call.1} parent=1 // pred_check_branch
      %673 = sbr.rel (0) target = $region33
    $region32: #{tpu_custom_call.1} parent=1 // pred_region
      %675 = vsyncadd [#allocation6], 0
      %s676 = sshll.u32 [#allocation7], 4
      %s677 = int_to_ptr.vmem [resolvable:$true] %s676
      %s678 = sshll.u32 %s6, 4
      %s679 = int_to_ptr.hbm [resolvable:$true] %s678
      %684 = dma.vmem_to_hbm [thread:$0]  %s677, 64, %s679, [#allocation6], 32, 32, 2
    $region33: #{tpu_custom_call.1} parent=1 // pred_fallthru
      _
    // Predicated region
    $region34: #{tpu_custom_call.1} parent=1 // pred_check
      _
    $region35: #{tpu_custom_call.1} parent=1 // pred_check_branch
      %686 = sbr.rel (0) target = $region37
    $region36: #{tpu_custom_call.1} parent=1 // pred_region
      %688 = dma.done [#allocation6], 64
    $region37: #{tpu_custom_call.1} parent=1 // pred_fallthru
      _
    %689 = vsyncpa [#allocation5], 1
    %690 = vsyncpa [#allocation6], 1

</llo_original>
